<compile_context>
chip_gen: v5e
topology: v5e:2x2
jax: 0.10.0
libtpu: 0.0.40
codegen_flags: <defaults>
</compile_context>

<pallas_src>
import math

import jax
import jax.numpy as jnp
from jax.experimental import pallas as pl
from jax.experimental.pallas import tpu as pltpu


def _layer_scale_kernel(x_ref, gamma_ref, o_ref):
    # x_ref: (tr, D_eff) block in VMEM; gamma_ref: (1, D_eff), broadcast along sublanes by the VPU.
    # Multiply in the promoted dtype, then cast to the output dtype.
    o_ref[...] = (x_ref[...] * gamma_ref[...]).astype(o_ref.dtype)


def _sublane_pack(itemsize: int) -> int:
    # Sublane packing: 8 rows for 4-byte, 16 for 2-byte, 32 for 1-byte dtypes.
    return max(8, 32 // max(1, itemsize))


def _choose_block_rows(rows: int, d_eff: int, itemsize: int, target_block_bytes: int) -> int:
    """Row tile of ~target_block_bytes, multiple of the sublane packing, prefer >=2 grid steps."""
    sub = _sublane_pack(itemsize)
    row_bytes = max(1, d_eff * itemsize)
    tr = max(sub, (target_block_bytes // row_bytes) // sub * sub)
    if tr < rows:
        return tr
    # Whole array fits in one target-size block.  If it is big enough to split, use two grid
    # steps so the "parallel" axis can shard across v7x's 2 TensorCores.
    if rows >= 2 * sub:
        half = ((rows + 1) // 2 + sub - 1) // sub * sub
        return min(half, rows)
    # Tiny input: one full-extent block (satisfies the full-dim exception to the (8,128) rule).
    return rows


def layer_scale(x: jax.Array, gamma: jax.Array, *, target_block_bytes: int = 2 << 20) -> jax.Array:
    """LayerScale forward: out = x * gamma, gamma shape (D,), broadcast over all leading dims."""
    orig_shape = x.shape
    D = orig_shape[-1]
    assert gamma.shape == (D,), f"gamma must have shape ({D},), got {gamma.shape}"

    rows = math.prod(orig_shape[:-1]) if len(orig_shape) > 1 else 1
    out_dtype = jnp.result_type(x.dtype, gamma.dtype)  # matches PyTorch promotion of x * gamma

    # Lane-dense repack: D < 128 wastes lanes and forces masked partial stores.  Since the
    # multiply is purely elementwise, flatten to a 128-lane-wide slab and tile gamma to match
    # whenever D divides 128 and the flat element count is 128-aligned.
    if D < 128 and 128 % D == 0 and (rows * D) % 128 == 0:
        d_eff = 128
        rows_eff = rows * D // 128
        x2 = x.reshape(rows_eff, d_eff)
        gamma_eff = jnp.tile(gamma, 128 // D)
    else:
        d_eff = D
        rows_eff = rows
        x2 = x.reshape(rows_eff, d_eff)
        gamma_eff = gamma

    # Keep gamma in its own dtype (usually f32); the product is formed in the promoted dtype.
    gamma2 = gamma_eff.reshape(1, d_eff)

    itemsize = jnp.dtype(x.dtype).itemsize
    tr = _choose_block_rows(rows_eff, d_eff, itemsize, target_block_bytes)
    grid = (pl.cdiv(rows_eff, tr),)

    out2 = pl.pallas_call(
        _layer_scale_kernel,
        out_shape=jax.ShapeDtypeStruct((rows_eff, d_eff), out_dtype),
        grid_spec=pltpu.PrefetchScalarGridSpec(
            num_scalar_prefetch=0,
            grid=grid,
            in_specs=[
                pl.BlockSpec((tr, d_eff), lambda i: (i, 0)),
                pl.BlockSpec((1, d_eff), lambda i: (0, 0)),  # constant block: not re-DMA'd per step
            ],
            out_specs=pl.BlockSpec((tr, d_eff), lambda i: (i, 0)),
        ),
        compiler_params=pltpu.CompilerParams(
            dimension_semantics=("parallel",),
            # ~2 MiB blocks * (2 in + 2 out double buffers) + gamma stays well under 32 MiB on
            # every generation; v5e's default scoped limit is only 16 MiB, so set it explicitly.
            vmem_limit_bytes=32 * 1024 * 1024,
        ),
    )(x2, gamma2)

    return out2.reshape(orig_shape)


if __name__ == "__main__":
    key = jax.random.PRNGKey(0)
    init_values = 1e-5

    # 1) Module-consistent small shape, D=32 < 128 -> lane-dense repack path.
    B, N, D = 2, 8, 32
    x = jax.random.normal(key, (B, N, D), dtype=jnp.float32)
    # Deterministic parameter init as in __init__: gamma = init_values * ones(dim).
    gamma = init_values * jnp.ones((D,), dtype=jnp.float32)
    out = jax.block_until_ready(layer_scale(x, gamma))
    ref = x * gamma
    assert out.shape == x.shape and out.dtype == x.dtype
    assert jnp.allclose(out, ref, rtol=1e-6, atol=1e-6), "mismatch vs reference (f32, D=32)"

    # 2) D multiple of 128 -> general (already lane-dense) path, multi-step grid.
    x_big = jax.random.normal(jax.random.fold_in(key, 1), (4, 16, 256), dtype=jnp.float32)
    gamma_big = init_values * jnp.ones((256,), dtype=jnp.float32)
    out_big = jax.block_until_ready(layer_scale(x_big, gamma_big))
    assert jnp.allclose(out_big, x_big * gamma_big, rtol=1e-6, atol=1e-6), "mismatch (f32, D=256)"

    # 3) bf16 activations with bf16 gamma (typical mixed-precision usage): bf16 in, bf16 out.
    x_bf = jax.random.normal(jax.random.fold_in(key, 2), (B, N, D), dtype=jnp.bfloat16)
    gamma_bf = gamma.astype(jnp.bfloat16)
    out_bf = jax.block_until_ready(layer_scale(x_bf, gamma_bf))
    ref_bf = x_bf * gamma_bf
    assert out_bf.dtype == jnp.bfloat16
    assert jnp.allclose(out_bf.astype(jnp.float32), ref_bf.astype(jnp.float32),
                        rtol=1e-2, atol=1e-6), "mismatch (bf16, D=32)"

    # 4) bf16 x with f32 gamma: PyTorch promotes x * gamma to f32; so do we.
    out_mix = jax.block_until_ready(layer_scale(x_bf, gamma))
    ref_mix = x_bf.astype(jnp.float32) * gamma
    assert out_mix.dtype == jnp.float32
    assert jnp.allclose(out_mix, ref_mix, rtol=1e-2, atol=1e-6), "mismatch (bf16 x, f32 gamma)"

    # TODO(synk): the `inplace=True` (x.mul_) variant has no aliasing equivalent here; it is
    # numerically identical to the out-of-place result returned by this kernel.
    print("KERNEL_OK")
</pallas_src>

<mosaic_0001>
module attributes {stable_mosaic.version = 11 : i64} {
  func.func @_layer_scale_kernel(%arg0: i32, %arg1: memref<4x128xf32, #tpu.memory_space<vmem>>, %arg2: memref<1x128xf32, #tpu.memory_space<vmem>>, %arg3: memref<4x128xf32, #tpu.memory_space<vmem>>) attributes {dimension_semantics = [#tpu.dimension_semantics<parallel>], iteration_bounds = array<i64: 1>, scalar_prefetch = 0 : i64, scratch_operands = 0 : i64, tpu.core_type = #tpu.core_type<tc>, window_params = [{transform_indices = @transform_0, window_bounds = array<i64: 4, 128>}, {pipeline_mode = #tpu.pipeline_mode<synchronous>, transform_indices = @transform_1, window_bounds = array<i64: 1, 128>}, {transform_indices = @transform_2, window_bounds = array<i64: 4, 128>}]} {
    %c0 = arith.constant 0 : index
    %c0_0 = arith.constant 0 : index
    %0 = vector.load %arg1[%c0, %c0_0] : memref<4x128xf32, #tpu.memory_space<vmem>>, vector<4x128xf32>
    %c0_1 = arith.constant 0 : index
    %c0_2 = arith.constant 0 : index
    %1 = vector.load %arg2[%c0_1, %c0_2] : memref<1x128xf32, #tpu.memory_space<vmem>>, vector<1x128xf32>
    %2 = vector.broadcast %1 : vector<1x128xf32> to vector<4x128xf32>
    %3 = arith.mulf %0, %2 : vector<4x128xf32>
    %c0_3 = arith.constant 0 : index
    %c0_4 = arith.constant 0 : index
    %4 = vector.load %arg3[%c0_3, %c0_4] : memref<4x128xf32, #tpu.memory_space<vmem>>, vector<4x128xf32>
    tpu.vector_store %arg3[%c0_3, %c0_4], %3 {strides = array<i32>} : memref<4x128xf32, #tpu.memory_space<vmem>>, vector<4x128xf32>,
    return
  }
  func.func @transform_0(%arg0: i32) -> (i32, i32) {
    %c0_i32 = arith.constant 0 : i32
    %c0_i32_0 = arith.constant 0 : i32
    return %arg0, %c0_i32 : i32, i32
  }
  func.func @transform_1(%arg0: i32) -> (i32, i32) {
    %c0_i32 = arith.constant 0 : i32
    %c0_i32_0 = arith.constant 0 : i32
    %c0_i32_1 = arith.constant 0 : i32
    return %c0_i32, %c0_i32_0 : i32, i32
  }
  func.func @transform_2(%arg0: i32) -> (i32, i32) {
    %c0_i32 = arith.constant 0 : i32
    %c0_i32_0 = arith.constant 0 : i32
    return %arg0, %c0_i32 : i32, i32
  }
}

</mosaic_0001>

<llo_original>
// kernel: tpu_custom_call.1
$region0: #{tpu_custom_call.1}
  #allocation0 [shape = 'u32[]', space=smem, size = 0x4, offset = 0x4, fixed_abs, tag = 'smem constant byte address 0x4 - core index']
  #allocation1 [shape = 'u32[72,128]{1,0:T(1,128)}', space=vmem, size = 0x9000, scoped, tag = 'internal scratch']
  %s0 = inlined_call_operand.hbm [shape: f32[4,128], index: 0, kind: input, shape index: {}]
  %s1 = inlined_call_operand.hbm [shape: f32[1,128], index: 1, kind: input, shape index: {}]
  %s2 = inlined_call_operand.hbm [shape: f32[4,128], index: 2, kind: output, shape index: {}]
  %s3 = sld [smem:[#allocation0]]
  $region26: #{tpu_custom_call.1} parent=0
    _
  %s5 = ssub.s32 1, %s3
  %s6 = scalar_select 0, %s5, %s3
  $region1: #{tpu_custom_call.1} parent=0
    #allocation2 [shape = 'u8[2048]{0}', space=vmem, size = 0x800, scoped, tag = 'input window, operand 0, single buffered']
    #allocation3 [shape = 's32[1]{0}', space=sflag, size = 0x4, scoped, tag = 'scoped memory for tpu_custom_call.1']
    #allocation4 [shape = 's32[1]{0}', space=sflag, size = 0x4, scoped, tag = 'scoped memory for tpu_custom_call.1']
    #allocation5 [shape = 'u8[512]{0}', space=vmem, size = 0x400, scoped, tag = 'input window, operand 1, single buffered']
    #allocation6 [shape = 's32[1]{0}', space=sflag, size = 0x4, scoped, tag = 'scoped memory for tpu_custom_call.1']
    #allocation7 [shape = 'u8[2048]{0}', space=vmem, size = 0x800, scoped, tag = 'output window, operand 0, single buffered']
    %7 = vsyncpa [#allocation3], 0
    %8 = vsyncpa [#allocation6], 0
    %9 = vsyncpa [#allocation4], 0
    // Predicated region
    $region2: #{tpu_custom_call.1} parent=1 // pred_check
      _
    $region3: #{tpu_custom_call.1} parent=1 // pred_check_branch
      %11 = sbr.rel (0) target = $region5
    $region4: #{tpu_custom_call.1} parent=1 // pred_region
      %13 = vsyncadd [#allocation3], 0
      %s15 = sshll.u32 %s0, 4
      %s16 = int_to_ptr.hbm [resolvable:$true] %s15
      %s17 = sshll.u32 [#allocation2], 4
      %s18 = int_to_ptr.vmem [resolvable:$true] %s17
      %20 = dma.hbm_to_vmem [thread:$0]  %s16, 64, %s18, [#allocation3]
    $region5: #{tpu_custom_call.1} parent=1 // pred_fallthru
      _
    // Predicated region
    $region6: #{tpu_custom_call.1} parent=1 // pred_check
      _
    $region7: #{tpu_custom_call.1} parent=1 // pred_check_branch
      %22 = sbr.rel (0) target = $region9
    $region8: #{tpu_custom_call.1} parent=1 // pred_region
      %24 = vsyncadd [#allocation6], 0
      %s26 = sshll.u32 %s1, 4
      %s27 = int_to_ptr.hbm [resolvable:$true] %s26
      %s28 = sshll.u32 [#allocation5], 4
      %s29 = int_to_ptr.vmem [resolvable:$true] %s28
      %31 = dma.hbm_to_vmem [thread:$0]  %s27, 16, %s29, [#allocation6]
    $region9: #{tpu_custom_call.1} parent=1 // pred_fallthru
      _
    // Predicated region
    $region10: #{tpu_custom_call.1} parent=1 // pred_check
      _
    $region11: #{tpu_custom_call.1} parent=1 // pred_check_branch
      %33 = sbr.rel (0) target = $region13
    $region12: #{tpu_custom_call.1} parent=1 // pred_region
      %35 = dma.done [#allocation3], 64
    $region13: #{tpu_custom_call.1} parent=1 // pred_fallthru
      _
    // Predicated region
    $region14: #{tpu_custom_call.1} parent=1 // pred_check
      _
    $region15: #{tpu_custom_call.1} parent=1 // pred_check_branch
      %37 = sbr.rel (0) target = $region17
    $region16: #{tpu_custom_call.1} parent=1 // pred_region
      %39 = dma.done [#allocation6], 16
    $region17: #{tpu_custom_call.1} parent=1 // pred_fallthru
      _
    %v40 = vld [vmem:[#allocation2] sm:$0xf]
    %v41 = vld [vmem:[#allocation5] sm:$0x1]
    %v43 = vperm.slane %v41, 0
    %v45 = vmul.f32 %v40, %v43
    %46 = vst [vmem:[#allocation7] sm:$0xf] %v45
    // Predicated region
    $region18: #{tpu_custom_call.1} parent=1 // pred_check
      _
    $region19: #{tpu_custom_call.1} parent=1 // pred_check_branch
      %48 = sbr.rel (0) target = $region21
    $region20: #{tpu_custom_call.1} parent=1 // pred_region
      %50 = vsyncadd [#allocation4], 0
      %s52 = sshll.u32 [#allocation7], 4
      %s53 = int_to_ptr.vmem [resolvable:$true] %s52
      %s54 = sshll.u32 %s2, 4
      %s55 = int_to_ptr.hbm [resolvable:$true] %s54
      %57 = dma.vmem_to_hbm [thread:$0]  %s53, 64, %s55, [#allocation4]
    $region21: #{tpu_custom_call.1} parent=1 // pred_fallthru
      _
    // Predicated region
    $region22: #{tpu_custom_call.1} parent=1 // pred_check
      _
    $region23: #{tpu_custom_call.1} parent=1 // pred_check_branch
      %59 = sbr.rel (0) target = $region25
    $region24: #{tpu_custom_call.1} parent=1 // pred_region
      %61 = dma.done [#allocation4], 64
    $region25: #{tpu_custom_call.1} parent=1 // pred_fallthru
      _
    %62 = vsyncpa [#allocation3], 1
    %63 = vsyncpa [#allocation6], 1
    %64 = vsyncpa [#allocation4], 1

</llo_original>
